<compile_context>
chip_gen: v7x
topology: tpu7x:2x2x1
jax: 0.10.0
libtpu: 0.0.40
codegen_flags: <defaults>
</compile_context>

<pallas_src>
import math
from functools import partial

import jax
import jax.numpy as jnp
from jax import lax
from jax.experimental import pallas as pl
from jax.experimental.pallas import tpu as pltpu

EPS = 1e-5  # nn.BatchNorm1d default eps
_SQRT_HALF = 1.0 / math.sqrt(2.0)


def _gelu_exact(x):
    # PyTorch nn.GELU() default == exact erf-based GELU.
    return 0.5 * x * (1.0 + lax.erf(x * _SQRT_HALF))


def _gelu_tanh(x):
    # Optional tanh approximation (lowers to the EUP slot, frees VALU).
    return jax.nn.gelu(x, approximate=True)


def residual_block_kernel(x_ref, w1t_ref, b1_ref, w2t_ref, b2_ref, o_ref, *, approx_gelu):
    gelu = _gelu_tanh if approx_gelu else _gelu_exact
    mxu_dtype = w1t_ref.dtype  # bf16 fast path (or f32 for bit-exact checking)

    # Linear1 (BN1 folded): cast the operand to the MXU dtype right at the dot.
    h = jnp.dot(x_ref[...].astype(mxu_dtype), w1t_ref[...],
                preferred_element_type=jnp.float32)
    h = gelu(h + b1_ref[...])                       # bias + GELU in f32

    # Linear2 (BN2 folded).
    h = jnp.dot(h.astype(mxu_dtype), w2t_ref[...],
                preferred_element_type=jnp.float32)
    h = gelu(h + b2_ref[...])

    # Residual: re-read the still-resident VMEM x tile here instead of keeping the
    # loaded value live across both matmuls (shorter live ranges -> less spill).
    o_ref[...] = h + x_ref[...]


def _fold_bn_into_linear(w, b, g, be, m, v):
    """Fold eval-mode BatchNorm1d into the preceding Linear (exact algebraic fold).

    w: [out, in] (PyTorch layout), b/g/be/m/v: [out]
    returns (w_folded [out, in], b_folded [out])
    """
    scale = g * lax.rsqrt(v + EPS)
    return w * scale[:, None], (b - m) * scale + be


def prepare_params(params, *, mxu_dtype=jnp.bfloat16):
    """One-time prep (outside the hot path): fold BN, transpose weights to [in, out],
    cast weights to the MXU dtype (bf16 by default), biases stay f32 as [1, D]."""
    w1f, b1f = _fold_bn_into_linear(params["w1"], params["b1"], params["g1"],
                                    params["be1"], params["m1"], params["v1"])
    w2f, b2f = _fold_bn_into_linear(params["w2"], params["b2"], params["g2"],
                                    params["be2"], params["m2"], params["v2"])
    return (jnp.asarray(w1f.T, mxu_dtype), b1f[None, :].astype(jnp.float32),
            jnp.asarray(w2f.T, mxu_dtype), b2f[None, :].astype(jnp.float32))


def _vmem_limit_bytes():
    """Per-generation VMEM budget: 7/8 of physical (112 MiB v5e/v6e, 56 MiB v7x)."""
    try:
        phys = pltpu.get_tpu_info().vmem_capacity_bytes
    except Exception:
        phys = 64 * 1024 * 1024  # conservative (v7x-sized) fallback
    return int(phys) * 7 // 8


@partial(jax.jit, static_argnames=("tm", "approx_gelu", "single_buffer_weights"))
def _residual_block_impl(x, w1t, b1, w2t, b2, *, tm, approx_gelu, single_buffer_weights):
    """x: [B, D] f32; w1t/w2t: [D, D] BN-folded & pre-transposed; b1/b2: [1, D] f32."""
    B, D = x.shape
    vmem_limit = _vmem_limit_bytes()

    # Pick the batch tile: as large as requested, but such that the double-buffered
    # x/out tiles + the resident weights fit the per-TensorCore VMEM budget
    # (each TC on a megacore chip holds its own weight copy).
    weight_bufs = 1 if single_buffer_weights else 2
    weight_bytes = weight_bufs * 2 * D * D * w1t.dtype.itemsize
    io_bytes_per_row = 2 * 2 * D * 4                    # x + out tiles, double-buffered, f32
    budget = max(vmem_limit - weight_bytes - (4 << 20), io_bytes_per_row * 8)
    max_tm = max(8, (budget // io_bytes_per_row) // 8 * 8)
    TM = min(tm, B, max_tm)                             # multiple of 8, or == B (full dim)
    num_tiles = pl.cdiv(B, TM)                          # ragged last block: no pad/slice copies

    wspec_kw = dict(pipeline_mode=pl.Buffered(1)) if single_buffer_weights else {}

    cost = pl.CostEstimate(
        flops=4 * B * D * D,                                    # two DxD matmuls
        transcendentals=2 * B * D,                              # two GELUs
        bytes_accessed=2 * B * D * 4 + 2 * D * D * w1t.dtype.itemsize + 2 * D * 4,
    )

    out = pl.pallas_call(
        partial(residual_block_kernel, approx_gelu=approx_gelu),
        out_shape=jax.ShapeDtypeStruct((B, D), jnp.float32),
        grid_spec=pltpu.PrefetchScalarGridSpec(
            num_scalar_prefetch=0,
            grid=(num_tiles,),
            in_specs=[
                pl.BlockSpec((TM, D), lambda i: (i, 0)),                # x tile (pipelined)
                pl.BlockSpec((D, D), lambda i: (0, 0), **wspec_kw),     # W1' resident
                pl.BlockSpec((1, D), lambda i: (0, 0), **wspec_kw),     # b1' resident
                pl.BlockSpec((D, D), lambda i: (0, 0), **wspec_kw),     # W2' resident
                pl.BlockSpec((1, D), lambda i: (0, 0), **wspec_kw),     # b2' resident
            ],
            out_specs=pl.BlockSpec((TM, D), lambda i: (i, 0)),
        ),
        compiler_params=pltpu.CompilerParams(
            dimension_semantics=("parallel",),          # megacore-friendly batch axis
            vmem_limit_bytes=vmem_limit,
        ),
        cost_estimate=cost,
    )(x, w1t, b1, w2t, b2)
    return out


def residual_block(x, w1t, b1, w2t, b2, *, tm=512, approx_gelu=False):
    try:
        return _residual_block_impl(x, w1t, b1, w2t, b2, tm=tm,
                                    approx_gelu=approx_gelu, single_buffer_weights=True)
    except Exception:
        # Fallback for JAX versions without BlockSpec(pipeline_mode=...): identical
        # semantics, just default (double-buffered) weight blocks.
        return _residual_block_impl(x, w1t, b1, w2t, b2, tm=tm,
                                    approx_gelu=approx_gelu, single_buffer_weights=False)


def init_params(key, dim):
    """Deterministic init matching nn.Linear / nn.BatchNorm1d defaults."""
    k1, k2, k3, k4 = jax.random.split(key, 4)
    bound = 1.0 / math.sqrt(dim)
    u = lambda k, shape: jax.random.uniform(k, shape, jnp.float32, -bound, bound)
    return {
        "w1": u(k1, (dim, dim)), "b1": u(k2, (dim,)),
        "g1": jnp.ones((dim,), jnp.float32), "be1": jnp.zeros((dim,), jnp.float32),
        "m1": jnp.zeros((dim,), jnp.float32), "v1": jnp.ones((dim,), jnp.float32),
        "w2": u(k3, (dim, dim)), "b2": u(k4, (dim,)),
        "g2": jnp.ones((dim,), jnp.float32), "be2": jnp.zeros((dim,), jnp.float32),
        "m2": jnp.zeros((dim,), jnp.float32), "v2": jnp.ones((dim,), jnp.float32),
    }


def reference(x, p):
    """Pure-JAX f32 reference of the eval-mode PyTorch forward (unfolded BN)."""
    def bn(h, g, be, m, v):
        return (h - m) / jnp.sqrt(v + EPS) * g + be
    gelu = lambda h: 0.5 * h * (1.0 + lax.erf(h / math.sqrt(2.0)))
    h = x @ p["w1"].T + p["b1"]
    h = gelu(bn(h, p["g1"], p["be1"], p["m1"], p["v1"]))
    h = h @ p["w2"].T + p["b2"]
    h = gelu(bn(h, p["g2"], p["be2"], p["m2"], p["v2"]))
    return h + x


def _check(B, DIM, tm, key, mxu_dtype, atol):
    kx, kp = jax.random.split(key)
    x = jax.random.normal(kx, (B, DIM), jnp.float32)
    params = init_params(kp, DIM)
    fused = prepare_params(params, mxu_dtype=mxu_dtype)   # fold BN + transpose once
    out = jax.block_until_ready(residual_block(x, *fused, tm=tm))
    ref = reference(x, params)
    assert out.shape == (B, DIM) and out.dtype == jnp.float32
    err = float(jnp.max(jnp.abs(out - ref)))
    assert err <= atol, f"max abs err {err} > {atol} (mxu_dtype={mxu_dtype})"
    return err


if __name__ == "__main__":
    key = jax.random.PRNGKey(0)
    k1, k2, k3 = jax.random.split(key, 3)

    # Small shape consistent with the module, f32 MXU path (bit-level agreement).
    _check(B=8, DIM=32, tm=256, key=k1, mxu_dtype=jnp.float32, atol=1e-4)
    # Same small shape on the bf16-MXU fast path (looser tolerance vs f32 reference).
    _check(B=8, DIM=32, tm=256, key=k2, mxu_dtype=jnp.bfloat16, atol=7.5e-2)
    # Modest shape exercising the batch grid, resident weights and the ragged last
    # block (B=384 with 256-row tiles -> second block only half valid, no pad/slice).
    _check(B=384, DIM=128, tm=256, key=k3, mxu_dtype=jnp.bfloat16, atol=7.5e-2)

    print("KERNEL_OK")
</pallas_src>

<mosaic_0001>
module attributes {stable_mosaic.version = 11 : i64} {
  func.func @residual_block_kernel(%arg0: i32, %arg1: memref<8x32xf32, #tpu.memory_space<vmem>>, %arg2: memref<32x32xf32, #tpu.memory_space<vmem>>, %arg3: memref<1x32xf32, #tpu.memory_space<vmem>>, %arg4: memref<32x32xf32, #tpu.memory_space<vmem>>, %arg5: memref<1x32xf32, #tpu.memory_space<vmem>>, %arg6: memref<8x32xf32, #tpu.memory_space<vmem>>) attributes {dimension_semantics = [#tpu.dimension_semantics<parallel>], iteration_bounds = array<i64: 1>, scalar_prefetch = 0 : i64, scratch_operands = 0 : i64, tpu.core_type = #tpu.core_type<tc>, window_params = [{transform_indices = @transform_0, window_bounds = array<i64: 8, 32>}, {pipeline_mode = #tpu.pipeline_mode<synchronous>, transform_indices = @transform_1, window_bounds = array<i64: 32, 32>}, {pipeline_mode = #tpu.pipeline_mode<synchronous>, transform_indices = @transform_2, window_bounds = array<i64: 1, 32>}, {pipeline_mode = #tpu.pipeline_mode<synchronous>, transform_indices = @transform_3, window_bounds = array<i64: 32, 32>}, {pipeline_mode = #tpu.pipeline_mode<synchronous>, transform_indices = @transform_4, window_bounds = array<i64: 1, 32>}, {transform_indices = @transform_5, window_bounds = array<i64: 8, 32>}]} {
    %c0 = arith.constant 0 : index
    %c0_0 = arith.constant 0 : index
    %0 = vector.load %arg1[%c0, %c0_0] : memref<8x32xf32, #tpu.memory_space<vmem>>, vector<8x32xf32>
    %c0_1 = arith.constant 0 : index
    %c0_2 = arith.constant 0 : index
    %1 = vector.load %arg2[%c0_1, %c0_2] : memref<32x32xf32, #tpu.memory_space<vmem>>, vector<32x32xf32>
    %cst = arith.constant dense<0.000000e+00> : vector<8x32xf32>
    %2 = tpu.matmul %0, %1, %cst {dimension_numbers = #tpu.dot_dimension_numbers<[1], [0], [0], [1], [0, 0, 1, 1], [], []>} : vector<8x32xf32>, vector<32x32xf32>, vector<8x32xf32> -> vector<8x32xf32>
    %c0_3 = arith.constant 0 : index
    %c0_4 = arith.constant 0 : index
    %3 = vector.load %arg3[%c0_3, %c0_4] : memref<1x32xf32, #tpu.memory_space<vmem>>, vector<1x32xf32>
    %4 = vector.broadcast %3 : vector<1x32xf32> to vector<8x32xf32>
    %5 = arith.addf %2, %4 : vector<8x32xf32>
    %cst_5 = arith.constant 5.000000e-01 : f32
    %6 = vector.broadcast %cst_5 : f32 to vector<8x32xf32>
    %7 = arith.mulf %6, %5 : vector<8x32xf32>
    %cst_6 = arith.constant 0.707106769 : f32
    %8 = vector.broadcast %cst_6 : f32 to vector<8x32xf32>
    %9 = arith.mulf %5, %8 : vector<8x32xf32>
    %10 = math.erf %9 : vector<8x32xf32>
    %cst_7 = arith.constant 1.000000e+00 : f32
    %11 = vector.broadcast %cst_7 : f32 to vector<8x32xf32>
    %12 = arith.addf %11, %10 : vector<8x32xf32>
    %13 = arith.mulf %7, %12 : vector<8x32xf32>
    %c0_8 = arith.constant 0 : index
    %c0_9 = arith.constant 0 : index
    %14 = vector.load %arg4[%c0_8, %c0_9] : memref<32x32xf32, #tpu.memory_space<vmem>>, vector<32x32xf32>
    %cst_10 = arith.constant dense<0.000000e+00> : vector<8x32xf32>
    %15 = tpu.matmul %13, %14, %cst_10 {dimension_numbers = #tpu.dot_dimension_numbers<[1], [0], [0], [1], [0, 0, 1, 1], [], []>} : vector<8x32xf32>, vector<32x32xf32>, vector<8x32xf32> -> vector<8x32xf32>
    %c0_11 = arith.constant 0 : index
    %c0_12 = arith.constant 0 : index
    %16 = vector.load %arg5[%c0_11, %c0_12] : memref<1x32xf32, #tpu.memory_space<vmem>>, vector<1x32xf32>
    %17 = vector.broadcast %16 : vector<1x32xf32> to vector<8x32xf32>
    %18 = arith.addf %15, %17 : vector<8x32xf32>
    %cst_13 = arith.constant 5.000000e-01 : f32
    %19 = vector.broadcast %cst_13 : f32 to vector<8x32xf32>
    %20 = arith.mulf %19, %18 : vector<8x32xf32>
    %cst_14 = arith.constant 0.707106769 : f32
    %21 = vector.broadcast %cst_14 : f32 to vector<8x32xf32>
    %22 = arith.mulf %18, %21 : vector<8x32xf32>
    %23 = math.erf %22 : vector<8x32xf32>
    %cst_15 = arith.constant 1.000000e+00 : f32
    %24 = vector.broadcast %cst_15 : f32 to vector<8x32xf32>
    %25 = arith.addf %24, %23 : vector<8x32xf32>
    %26 = arith.mulf %20, %25 : vector<8x32xf32>
    %c0_16 = arith.constant 0 : index
    %c0_17 = arith.constant 0 : index
    %27 = vector.load %arg1[%c0_16, %c0_17] : memref<8x32xf32, #tpu.memory_space<vmem>>, vector<8x32xf32>
    %28 = arith.addf %26, %27 : vector<8x32xf32>
    %c0_18 = arith.constant 0 : index
    %c0_19 = arith.constant 0 : index
    %29 = vector.load %arg6[%c0_18, %c0_19] : memref<8x32xf32, #tpu.memory_space<vmem>>, vector<8x32xf32>
    tpu.vector_store %arg6[%c0_18, %c0_19], %28 {strides = array<i32>} : memref<8x32xf32, #tpu.memory_space<vmem>>, vector<8x32xf32>,
    return
  }
  func.func @transform_0(%arg0: i32) -> (i32, i32) {
    %c0_i32 = arith.constant 0 : i32
    %c0_i32_0 = arith.constant 0 : i32
    return %arg0, %c0_i32 : i32, i32
  }
  func.func @transform_1(%arg0: i32) -> (i32, i32) {
    %c0_i32 = arith.constant 0 : i32
    %c0_i32_0 = arith.constant 0 : i32
    %c0_i32_1 = arith.constant 0 : i32
    return %c0_i32, %c0_i32_0 : i32, i32
  }
  func.func @transform_2(%arg0: i32) -> (i32, i32) {
    %c0_i32 = arith.constant 0 : i32
    %c0_i32_0 = arith.constant 0 : i32
    %c0_i32_1 = arith.constant 0 : i32
    return %c0_i32, %c0_i32_0 : i32, i32
  }
  func.func @transform_3(%arg0: i32) -> (i32, i32) {
    %c0_i32 = arith.constant 0 : i32
    %c0_i32_0 = arith.constant 0 : i32
    %c0_i32_1 = arith.constant 0 : i32
    return %c0_i32, %c0_i32_0 : i32, i32
  }
  func.func @transform_4(%arg0: i32) -> (i32, i32) {
    %c0_i32 = arith.constant 0 : i32
    %c0_i32_0 = arith.constant 0 : i32
    %c0_i32_1 = arith.constant 0 : i32
    return %c0_i32, %c0_i32_0 : i32, i32
  }
  func.func @transform_5(%arg0: i32) -> (i32, i32) {
    %c0_i32 = arith.constant 0 : i32
    %c0_i32_0 = arith.constant 0 : i32
    return %arg0, %c0_i32 : i32, i32
  }
}

module attributes {stable_mosaic.version = 11 : i64} {
  func.func @residual_block_kernel(%arg0: i32, %arg1: memref<8x32xf32, #tpu.memory_space<vmem>>, %arg2: memref<32x32xf32, #tpu.memory_space<vmem>>, %arg3: memref<1x32xf32, #tpu.memory_space<vmem>>, %arg4: memref<32x32xf32, #tpu.memory_space<vmem>>, %arg5: memref<1x32xf32, #tpu.memory_space<vmem>>, %arg6: memref<8x32xf32, #tpu.memory_space<vmem>>) attributes {dimension_semantics = [#tpu.dimension_semantics<parallel>], iteration_bounds = array<i64: 1>, scalar_prefetch = 0 : i64, scratch_operands = 0 : i64, tpu.core_type = #tpu.core_type<tc>, window_params = [{transform_indices = @transform_0, window_bounds = array<i64: 8, 32>}, {pipeline_mode = #tpu.pipeline_mode<synchronous>, transform_indices = @transform_1, window_bounds = array<i64: 32, 32>}, {pipeline_mode = #tpu.pipeline_mode<synchronous>, transform_indices = @transform_2, window_bounds = array<i64: 1, 32>}, {pipeline_mode = #tpu.pipeline_mode<synchronous>, transform_indices = @transform_3, window_bounds = array<i64: 32, 32>}, {pipeline_mode = #tpu.pipeline_mode<synchronous>, transform_indices = @transform_4, window_bounds = array<i64: 1, 32>}, {transform_indices = @transform_5, window_bounds = array<i64: 8, 32>}]} {
    %c0 = arith.constant 0 : index
    %c0_0 = arith.constant 0 : index
    %0 = vector.load %arg1[%c0, %c0_0] : memref<8x32xf32, #tpu.memory_space<vmem>>, vector<8x32xf32>
    %c0_1 = arith.constant 0 : index
    %c0_2 = arith.constant 0 : index
    %1 = vector.load %arg2[%c0_1, %c0_2] : memref<32x32xf32, #tpu.memory_space<vmem>>, vector<32x32xf32>
    %cst = arith.constant dense<0.000000e+00> : vector<8x32xf32>
    %2 = tpu.matmul %0, %1, %cst {dimension_numbers = #tpu.dot_dimension_numbers<[1], [0], [0], [1], [0, 0, 1, 1], [], []>} : vector<8x32xf32>, vector<32x32xf32>, vector<8x32xf32> -> vector<8x32xf32>
    %c0_3 = arith.constant 0 : index
    %c0_4 = arith.constant 0 : index
    %3 = vector.load %arg3[%c0_3, %c0_4] : memref<1x32xf32, #tpu.memory_space<vmem>>, vector<1x32xf32>
    %4 = vector.broadcast %3 : vector<1x32xf32> to vector<8x32xf32>
    %5 = arith.addf %2, %4 : vector<8x32xf32>
    %cst_5 = arith.constant 5.000000e-01 : f32
    %6 = vector.broadcast %cst_5 : f32 to vector<8x32xf32>
    %7 = arith.mulf %6, %5 : vector<8x32xf32>
    %cst_6 = arith.constant 0.707106769 : f32
    %8 = vector.broadcast %cst_6 : f32 to vector<8x32xf32>
    %9 = arith.mulf %5, %8 : vector<8x32xf32>
    %10 = math.erf %9 : vector<8x32xf32>
    %cst_7 = arith.constant 1.000000e+00 : f32
    %11 = vector.broadcast %cst_7 : f32 to vector<8x32xf32>
    %12 = arith.addf %11, %10 : vector<8x32xf32>
    %13 = arith.mulf %7, %12 : vector<8x32xf32>
    %c0_8 = arith.constant 0 : index
    %c0_9 = arith.constant 0 : index
    %14 = vector.load %arg4[%c0_8, %c0_9] : memref<32x32xf32, #tpu.memory_space<vmem>>, vector<32x32xf32>
    %cst_10 = arith.constant dense<0.000000e+00> : vector<8x32xf32>
    %15 = tpu.matmul %13, %14, %cst_10 {dimension_numbers = #tpu.dot_dimension_numbers<[1], [0], [0], [1], [0, 0, 1, 1], [], []>} : vector<8x32xf32>, vector<32x32xf32>, vector<8x32xf32> -> vector<8x32xf32>
    %c0_11 = arith.constant 0 : index
    %c0_12 = arith.constant 0 : index
    %16 = vector.load %arg5[%c0_11, %c0_12] : memref<1x32xf32, #tpu.memory_space<vmem>>, vector<1x32xf32>
    %17 = vector.broadcast %16 : vector<1x32xf32> to vector<8x32xf32>
    %18 = arith.addf %15, %17 : vector<8x32xf32>
    %cst_13 = arith.constant 5.000000e-01 : f32
    %19 = vector.broadcast %cst_13 : f32 to vector<8x32xf32>
    %20 = arith.mulf %19, %18 : vector<8x32xf32>
    %cst_14 = arith.constant 0.707106769 : f32
    %21 = vector.broadcast %cst_14 : f32 to vector<8x32xf32>
    %22 = arith.mulf %18, %21 : vector<8x32xf32>
    %23 = math.erf %22 : vector<8x32xf32>
    %cst_15 = arith.constant 1.000000e+00 : f32
    %24 = vector.broadcast %cst_15 : f32 to vector<8x32xf32>
    %25 = arith.addf %24, %23 : vector<8x32xf32>
    %26 = arith.mulf %20, %25 : vector<8x32xf32>
    %c0_16 = arith.constant 0 : index
    %c0_17 = arith.constant 0 : index
    %27 = vector.load %arg1[%c0_16, %c0_17] : memref<8x32xf32, #tpu.memory_space<vmem>>, vector<8x32xf32>
    %28 = arith.addf %26, %27 : vector<8x32xf32>
    %c0_18 = arith.constant 0 : index
    %c0_19 = arith.constant 0 : index
    %29 = vector.load %arg6[%c0_18, %c0_19] : memref<8x32xf32, #tpu.memory_space<vmem>>, vector<8x32xf32>
    tpu.vector_store %arg6[%c0_18, %c0_19], %28 {strides = array<i32>} : memref<8x32xf32, #tpu.memory_space<vmem>>, vector<8x32xf32>,
    return
  }
  func.func @transform_0(%arg0: i32) -> (i32, i32) {
    %c0_i32 = arith.constant 0 : i32
    %c0_i32_0 = arith.constant 0 : i32
    return %arg0, %c0_i32 : i32, i32
  }
  func.func @transform_1(%arg0: i32) -> (i32, i32) {
    %c0_i32 = arith.constant 0 : i32
    %c0_i32_0 = arith.constant 0 : i32
    %c0_i32_1 = arith.constant 0 : i32
    return %c0_i32, %c0_i32_0 : i32, i32
  }
  func.func @transform_2(%arg0: i32) -> (i32, i32) {
    %c0_i32 = arith.constant 0 : i32
    %c0_i32_0 = arith.constant 0 : i32
    %c0_i32_1 = arith.constant 0 : i32
    return %c0_i32, %c0_i32_0 : i32, i32
  }
  func.func @transform_3(%arg0: i32) -> (i32, i32) {
    %c0_i32 = arith.constant 0 : i32
    %c0_i32_0 = arith.constant 0 : i32
    %c0_i32_1 = arith.constant 0 : i32
    return %c0_i32, %c0_i32_0 : i32, i32
  }
  func.func @transform_4(%arg0: i32) -> (i32, i32) {
    %c0_i32 = arith.constant 0 : i32
    %c0_i32_0 = arith.constant 0 : i32
    %c0_i32_1 = arith.constant 0 : i32
    return %c0_i32, %c0_i32_0 : i32, i32
  }
  func.func @transform_5(%arg0: i32) -> (i32, i32) {
    %c0_i32 = arith.constant 0 : i32
    %c0_i32_0 = arith.constant 0 : i32
    return %arg0, %c0_i32 : i32, i32
  }
}

</mosaic_0001>

<llo_original>
// kernel: _residual_block_impl.1
$region0: #{_residual_block_impl.1}
  #allocation0 [shape = 'u32[]', space=smem, size = 0x4, offset = 0x4, fixed_abs, tag = 'smem constant byte address 0x4 - core index']
  #allocation1 [shape = 'u32[144,128]{1,0:T(1,128)}', space=vmem, size = 0x12000, scoped, tag = 'internal scratch']
  %s0 = inlined_call_operand.hbm [shape: f32[8,32], index: 0, kind: input, shape index: {}]
  %s1 = inlined_call_operand.hbm [shape: f32[32,32], index: 1, kind: input, shape index: {}]
  %s2 = inlined_call_operand.vmem [shape: f32[1,32], index: 2, kind: input, shape index: {}]
  %s3 = inlined_call_operand.hbm [shape: f32[32,32], index: 3, kind: input, shape index: {}]
  %s4 = inlined_call_operand.vmem [shape: f32[1,32], index: 4, kind: input, shape index: {}]
  %s5 = inlined_call_operand.hbm [shape: f32[8,32], index: 5, kind: output, shape index: {}]
  %s6 = sld [smem:[#allocation0]]
  $region42: #{_residual_block_impl.1} parent=0
    _
  %s8 = ssub.s32 1, %s6
  %s9 = scalar_select 0, %s8, %s6
  $region1: #{_residual_block_impl.1} parent=0
    #allocation2 [shape = 'u8[4096]{0}', space=vmem, size = 0x1000, scoped, tag = 'input window, operand 0, single buffered']
    #allocation3 [shape = 's32[1]{0}', space=sflag, size = 0x4, scoped, tag = 'scoped memory for _residual_block_impl.1']
    #allocation4 [shape = 's32[1]{0}', space=sflag, size = 0x4, scoped, tag = 'scoped memory for _residual_block_impl.1']
    #allocation5 [shape = 'u8[16384]{0}', space=vmem, size = 0x4000, scoped, tag = 'input window, operand 1, single buffered']
    #allocation6 [shape = 's32[1]{0}', space=sflag, size = 0x4, scoped, tag = 'scoped memory for _residual_block_impl.1']
    #allocation7 [shape = 'u8[16384]{0}', space=vmem, size = 0x4000, scoped, tag = 'input window, operand 3, single buffered']
    #allocation8 [shape = 'u8[4096]{0}', space=vmem, size = 0x1000, scoped, tag = 'output window, operand 0, single buffered']
    %10 = vsyncpa [#allocation3], 0
    %11 = vsyncpa [#allocation6], 0
    %12 = vsyncpa [#allocation4], 0
    // Predicated region
    $region2: #{_residual_block_impl.1} parent=1 // pred_check
      _
    $region3: #{_residual_block_impl.1} parent=1 // pred_check_branch
      %14 = sbr.rel (0) target = $region5
    $region4: #{_residual_block_impl.1} parent=1 // pred_region
      %s16 = ssub.s32 128, 128
      %17 = vsyncadd [#allocation3], %s16
      %s19 = sshll.u32 [#allocation2], 4
      %s20 = int_to_ptr.vmem [resolvable:$true] %s19
      %22 = dma.hbm_to_vmem [thread:$0]  %s0, 128, %s20, [#allocation3]
    $region5: #{_residual_block_impl.1} parent=1 // pred_fallthru
      _
    // Predicated region
    $region6: #{_residual_block_impl.1} parent=1 // pred_check
      _
    $region7: #{_residual_block_impl.1} parent=1 // pred_check_branch
      %24 = sbr.rel (0) target = $region9
    $region8: #{_residual_block_impl.1} parent=1 // pred_region
      %s26 = ssub.s32 512, 512
      %27 = vsyncadd [#allocation6], %s26
      %s28 = sshll.u32 [#allocation5], 4
      %s29 = int_to_ptr.vmem [resolvable:$true] %s28
      %34 = dma.hbm_to_vmem [thread:$0]  %s1, 512, %s29, [#allocation6], 128, 128, 8
    $region9: #{_residual_block_impl.1} parent=1 // pred_fallthru
      _
    // Predicated region
    $region10: #{_residual_block_impl.1} parent=1 // pred_check
      _
    $region11: #{_residual_block_impl.1} parent=1 // pred_check_branch
      %36 = sbr.rel (0) target = $region13
    $region12: #{_residual_block_impl.1} parent=1 // pred_region
      _
    $region13: #{_residual_block_impl.1} parent=1 // pred_fallthru
      _
    // Predicated region
    $region14: #{_residual_block_impl.1} parent=1 // pred_check
      _
    $region15: #{_residual_block_impl.1} parent=1 // pred_check_branch
      %38 = sbr.rel (0) target = $region17
    $region16: #{_residual_block_impl.1} parent=1 // pred_region
      %s40 = ssub.s32 512, 512
      %41 = vsyncadd [#allocation6], %s40
      %s42 = sshll.u32 [#allocation7], 4
      %s43 = int_to_ptr.vmem [resolvable:$true] %s42
      %48 = dma.hbm_to_vmem [thread:$0]  %s3, 512, %s43, [#allocation6], 128, 128, 8
    $region17: #{_residual_block_impl.1} parent=1 // pred_fallthru
      _
    // Predicated region
    $region18: #{_residual_block_impl.1} parent=1 // pred_check
      _
    $region19: #{_residual_block_impl.1} parent=1 // pred_check_branch
      %50 = sbr.rel (0) target = $region21
    $region20: #{_residual_block_impl.1} parent=1 // pred_region
      _
    $region21: #{_residual_block_impl.1} parent=1 // pred_fallthru
      _
    // Predicated region
    $region22: #{_residual_block_impl.1} parent=1 // pred_check
      _
    $region23: #{_residual_block_impl.1} parent=1 // pred_check_branch
      %52 = sbr.rel (0) target = $region25
    $region24: #{_residual_block_impl.1} parent=1 // pred_region
      %53 = dma.done [#allocation3], 128
    $region25: #{_residual_block_impl.1} parent=1 // pred_fallthru
      _
    // Predicated region
    $region26: #{_residual_block_impl.1} parent=1 // pred_check
      _
    $region27: #{_residual_block_impl.1} parent=1 // pred_check_branch
      %55 = sbr.rel (0) target = $region29
    $region28: #{_residual_block_impl.1} parent=1 // pred_region
      %56 = dma.done [#allocation6], 512
    $region29: #{_residual_block_impl.1} parent=1 // pred_fallthru
      _
    // Predicated region
    $region30: #{_residual_block_impl.1} parent=1 // pred_check
      _
    $region31: #{_residual_block_impl.1} parent=1 // pred_check_branch
      %58 = sbr.rel (0) target = $region33
    $region32: #{_residual_block_impl.1} parent=1 // pred_region
      %59 = dma.done [#allocation6], 512
    $region33: #{_residual_block_impl.1} parent=1 // pred_fallthru
      _
    %v60 = vld [vmem:[#allocation2] sm:$0xff]
    %v61 = vld [vmem:[#allocation5] sm:$0xff]
    %v62 = vld [vmem:[#allocation5 + $0x8] sm:$0xff]
    %v63 = vld [vmem:[#allocation5 + $0x10] sm:$0xff]
    %v64 = vld [vmem:[#allocation5 + $0x18] sm:$0xff]
    %v65 = vld [vmem:[%s2] sm:$0x1]
    %v67 = vlaneseq
    %v68 = vshrl.u32 %v67, 7
    %v69 = vsub.s32 0, %v68
    %v70 = vrot.slane %v65, %v69
    %vm72 = vcmask 261120
    %v74 = vsel %vm72, %v60, 0
    %76 = vmatprep.subr.mxu0 0.0
    %77 = vmatpush1.msra.mxu0 %v61
    %78 = vmatprep.subr.mxu0 0.0
    %79 = vmatpush1.msra.mxu0 %v62
    %80 = vmatprep.subr.mxu0 0.0
    %81 = vmatpush1.msra.mxu0 %v63
    %82 = vmatprep.subr.mxu0 0.0
    %83 = vmatpush1.msra.mxu0 %v64
    %84 = vmatprep.subr.mxu0 0.0
    %85 = vmatpush1.msra.mxu0 0.0
    %86 = vmatprep.subr.mxu0 0.0
    %87 = vmatpush1.msra.mxu0 0.0
    %88 = vmatprep.subr.mxu0 0.0
    %89 = vmatpush1.msra.mxu0 0.0
    %90 = vmatprep.subr.mxu0 0.0
    %91 = vmatpush1.msra.mxu0 0.0
    %92 = vmatprep.subr.mxu0 0.0
    %93 = vmatpush1.msra.mxu0 0.0
    %94 = vmatprep.subr.mxu0 0.0
    %95 = vmatpush1.msra.mxu0 0.0
    %96 = vmatprep.subr.mxu0 0.0
    %97 = vmatpush1.msra.mxu0 0.0
    %98 = vmatprep.subr.mxu0 0.0
    %99 = vmatpush1.msra.mxu0 0.0
    %100 = vmatprep.subr.mxu0 0.0
    %101 = vmatpush1.msra.mxu0 0.0
    %102 = vmatprep.subr.mxu0 0.0
    %103 = vmatpush1.msra.mxu0 0.0
    %104 = vmatprep.subr.mxu0 0.0
    %105 = vmatpush1.msra.mxu0 0.0
    %106 = vmatprep.subr.mxu0 0.0
    %107 = vmatpush1.msra.mxu0 0.0
    %108 = vmatprep.subr.mxu0 0.0
    %109 = vmatpush1.msra.mxu0 0.0
    %110 = vmatprep.subr.mxu0 0.0
    %111 = vmatpush1.msra.mxu0 0.0
    %112 = vmatprep.subr.mxu0 0.0
    %113 = vmatpush1.msra.mxu0 0.0
    %114 = vmatprep.subr.mxu0 0.0
    %115 = vmatpush1.msra.mxu0 0.0
    %116 = vmatprep.subr.mxu0 0.0
    %117 = vmatpush1.msra.mxu0 0.0
    %118 = vmatprep.subr.mxu0 0.0
    %119 = vmatpush1.msra.mxu0 0.0
    %120 = vmatprep.subr.mxu0 0.0
    %121 = vmatpush1.msra.mxu0 0.0
    %122 = vmatprep.subr.mxu0 0.0
    %123 = vmatpush1.msra.mxu0 0.0
    %124 = vmatprep.subr.mxu0 0.0
    %125 = vmatpush1.msra.mxu0 0.0
    %126 = vmatprep.subr.mxu0 0.0
    %127 = vmatpush1.msra.mxu0 0.0
    %128 = vmatprep.subr.mxu0 0.0
    %129 = vmatpush1.msra.mxu0 0.0
    %130 = vmatprep.subr.mxu0 0.0
    %131 = vmatpush1.msra.mxu0 0.0
    %132 = vmatprep.subr.mxu0 0.0
    %133 = vmatpush1.msra.mxu0 0.0
    %134 = vmatprep.subr.mxu0 0.0
    %135 = vmatpush1.msra.mxu0 0.0
    %136 = vmatprep.subr.mxu0 0.0
    %137 = vmatpush1.msra.mxu0 0.0
    %138 = vmatprep.subr.mxu0 0.0
    %139 = vmatpush1.msra.mxu0 0.0
    %140 = vmatprep.mubr.f32.mxu0 0.0
    %141 = vmatmul.mubr.f32.gmra.mrb[0].mxu0 %v74
    %v142 = vpop.f32.mrb[0].mxu0
    %v143 = vadd.f32 %v70, %v142
    %v144 = vpop.f32.mrb[0].mxu0
    %145 = vdwg.mxu0
    %v146 = vmul.f32 %v143, 0.5
    %v147 = vmul.f32 %v143, 0.70710677
    %v148 = verf.f32.pop %v147
    %v149 = vadd.f32 %v148, 1.0
    %v150 = vmul.f32 %v146, %v149
    %v151 = vld [vmem:[#allocation7] sm:$0xff]
    %v152 = vld [vmem:[#allocation7 + $0x8] sm:$0xff]
    %v153 = vld [vmem:[#allocation7 + $0x10] sm:$0xff]
    %v154 = vld [vmem:[#allocation7 + $0x18] sm:$0xff]
    %v155 = vld [vmem:[%s4] sm:$0x1]
    %v157 = vlaneseq
    %v158 = vshrl.u32 %v157, 7
    %v159 = vsub.s32 0, %v158
    %v160 = vrot.slane %v155, %v159
    %v163 = vsel %vm72, %v150, 0
    %165 = vmatprep.subr.mxu0 0.0
    %166 = vmatpush1.msra.mxu0 %v151
    %167 = vmatprep.subr.mxu0 0.0
    %168 = vmatpush1.msra.mxu0 %v152
    %169 = vmatprep.subr.mxu0 0.0
    %170 = vmatpush1.msra.mxu0 %v153
    %171 = vmatprep.subr.mxu0 0.0
    %172 = vmatpush1.msra.mxu0 %v154
    %173 = vmatprep.subr.mxu0 0.0
    %174 = vmatpush1.msra.mxu0 0.0
    %175 = vmatprep.subr.mxu0 0.0
    %176 = vmatpush1.msra.mxu0 0.0
    %177 = vmatprep.subr.mxu0 0.0
    %178 = vmatpush1.msra.mxu0 0.0
    %179 = vmatprep.subr.mxu0 0.0
    %180 = vmatpush1.msra.mxu0 0.0
    %181 = vmatprep.subr.mxu0 0.0
    %182 = vmatpush1.msra.mxu0 0.0
    %183 = vmatprep.subr.mxu0 0.0
    %184 = vmatpush1.msra.mxu0 0.0
    %185 = vmatprep.subr.mxu0 0.0
    %186 = vmatpush1.msra.mxu0 0.0
    %187 = vmatprep.subr.mxu0 0.0
    %188 = vmatpush1.msra.mxu0 0.0
    %189 = vmatprep.subr.mxu0 0.0
    %190 = vmatpush1.msra.mxu0 0.0
    %191 = vmatprep.subr.mxu0 0.0
    %192 = vmatpush1.msra.mxu0 0.0
    %193 = vmatprep.subr.mxu0 0.0
    %194 = vmatpush1.msra.mxu0 0.0
    %195 = vmatprep.subr.mxu0 0.0
    %196 = vmatpush1.msra.mxu0 0.0
    %197 = vmatprep.subr.mxu0 0.0
    %198 = vmatpush1.msra.mxu0 0.0
    %199 = vmatprep.subr.mxu0 0.0
    %200 = vmatpush1.msra.mxu0 0.0
    %201 = vmatprep.subr.mxu0 0.0
    %202 = vmatpush1.msra.mxu0 0.0
    %203 = vmatprep.subr.mxu0 0.0
    %204 = vmatpush1.msra.mxu0 0.0
    %205 = vmatprep.subr.mxu0 0.0
    %206 = vmatpush1.msra.mxu0 0.0
    %207 = vmatprep.subr.mxu0 0.0
    %208 = vmatpush1.msra.mxu0 0.0
    %209 = vmatprep.subr.mxu0 0.0
    %210 = vmatpush1.msra.mxu0 0.0
    %211 = vmatprep.subr.mxu0 0.0
    %212 = vmatpush1.msra.mxu0 0.0
    %213 = vmatprep.subr.mxu0 0.0
    %214 = vmatpush1.msra.mxu0 0.0
    %215 = vmatprep.subr.mxu0 0.0
    %216 = vmatpush1.msra.mxu0 0.0
    %217 = vmatprep.subr.mxu0 0.0
    %218 = vmatpush1.msra.mxu0 0.0
    %219 = vmatprep.subr.mxu0 0.0
    %220 = vmatpush1.msra.mxu0 0.0
    %221 = vmatprep.subr.mxu0 0.0
    %222 = vmatpush1.msra.mxu0 0.0
    %223 = vmatprep.subr.mxu0 0.0
    %224 = vmatpush1.msra.mxu0 0.0
    %225 = vmatprep.subr.mxu0 0.0
    %226 = vmatpush1.msra.mxu0 0.0
    %227 = vmatprep.subr.mxu0 0.0
    %228 = vmatpush1.msra.mxu0 0.0
    %229 = vmatprep.mubr.f32.mxu0 0.0
    %230 = vmatmul.mubr.f32.gmra.mrb[0].mxu0 %v163
    %v231 = vpop.f32.mrb[0].mxu0
    %v232 = vadd.f32 %v160, %v231
    %v233 = vpop.f32.mrb[0].mxu0
    %234 = vdwg.mxu0
    %v235 = vmul.f32 %v232, 0.5
    %v236 = vmul.f32 %v232, 0.70710677
    %v237 = verf.f32.pop %v236
    %v238 = vadd.f32 %v237, 1.0
    %v239 = vmul.f32 %v235, %v238
    %v240 = vadd.f32 %v239, %v60
    %241 = vst.msk [vmem:[#allocation8] sm:$0xff] %vm72, %v240
    // Predicated region
    $region34: #{_residual_block_impl.1} parent=1 // pred_check
      _
    $region35: #{_residual_block_impl.1} parent=1 // pred_check_branch
      %243 = sbr.rel (0) target = $region37
    $region36: #{_residual_block_impl.1} parent=1 // pred_region
      %s245 = ssub.s32 128, 128
      %246 = vsyncadd [#allocation4], %s245
      %s248 = sshll.u32 [#allocation8], 4
      %s249 = int_to_ptr.vmem [resolvable:$true] %s248
      %251 = dma.vmem_to_hbm [thread:$0]  %s249, 128, %s5, [#allocation4]
    $region37: #{_residual_block_impl.1} parent=1 // pred_fallthru
      _
    // Predicated region
    $region38: #{_residual_block_impl.1} parent=1 // pred_check
      _
    $region39: #{_residual_block_impl.1} parent=1 // pred_check_branch
      %253 = sbr.rel (0) target = $region41
    $region40: #{_residual_block_impl.1} parent=1 // pred_region
      %254 = dma.done [#allocation4], 128
    $region41: #{_residual_block_impl.1} parent=1 // pred_fallthru
      _
    %255 = vsyncpa [#allocation3], 1
    %256 = vsyncpa [#allocation6], 1
    %257 = vsyncpa [#allocation4], 1

// kernel: _residual_block_impl.1
$region0: #{_residual_block_impl.1}
  #allocation0 [shape = 'u32[]', space=smem, size = 0x4, offset = 0x4, fixed_abs, tag = 'smem constant byte address 0x4 - core index']
  #allocation1 [shape = 'u32[144,128]{1,0:T(1,128)}', space=vmem, size = 0x12000, scoped, tag = 'internal scratch']
  %s0 = inlined_call_operand.hbm [shape: f32[8,32], index: 0, kind: input, shape index: {}]
  %s1 = inlined_call_operand.hbm [shape: f32[32,32], index: 1, kind: input, shape index: {}]
  %s2 = inlined_call_operand.vmem [shape: f32[1,32], index: 2, kind: input, shape index: {}]
  %s3 = inlined_call_operand.hbm [shape: f32[32,32], index: 3, kind: input, shape index: {}]
  %s4 = inlined_call_operand.vmem [shape: f32[1,32], index: 4, kind: input, shape index: {}]
  %s5 = inlined_call_operand.hbm [shape: f32[8,32], index: 5, kind: output, shape index: {}]
  %s6 = sld [smem:[#allocation0]]
  $region42: #{_residual_block_impl.1} parent=0
    _
  %s8 = ssub.s32 1, %s6
  %s9 = scalar_select 0, %s8, %s6
  $region1: #{_residual_block_impl.1} parent=0
    #allocation2 [shape = 'u8[4096]{0}', space=vmem, size = 0x1000, scoped, tag = 'input window, operand 0, single buffered']
    #allocation3 [shape = 's32[1]{0}', space=sflag, size = 0x4, scoped, tag = 'scoped memory for _residual_block_impl.1']
    #allocation4 [shape = 's32[1]{0}', space=sflag, size = 0x4, scoped, tag = 'scoped memory for _residual_block_impl.1']
    #allocation5 [shape = 'u8[16384]{0}', space=vmem, size = 0x4000, scoped, tag = 'input window, operand 1, single buffered']
    #allocation6 [shape = 's32[1]{0}', space=sflag, size = 0x4, scoped, tag = 'scoped memory for _residual_block_impl.1']
    #allocation7 [shape = 'u8[16384]{0}', space=vmem, size = 0x4000, scoped, tag = 'input window, operand 3, single buffered']
    #allocation8 [shape = 'u8[4096]{0}', space=vmem, size = 0x1000, scoped, tag = 'output window, operand 0, single buffered']
    %10 = vsyncpa [#allocation3], 0
    %11 = vsyncpa [#allocation6], 0
    %12 = vsyncpa [#allocation4], 0
    // Predicated region
    $region2: #{_residual_block_impl.1} parent=1 // pred_check
      _
    $region3: #{_residual_block_impl.1} parent=1 // pred_check_branch
      %14 = sbr.rel (0) target = $region5
    $region4: #{_residual_block_impl.1} parent=1 // pred_region
      %s16 = ssub.s32 128, 128
      %17 = vsyncadd [#allocation3], %s16
      %s19 = sshll.u32 [#allocation2], 4
      %s20 = int_to_ptr.vmem [resolvable:$true] %s19
      %22 = dma.hbm_to_vmem [thread:$0]  %s0, 128, %s20, [#allocation3]
    $region5: #{_residual_block_impl.1} parent=1 // pred_fallthru
      _
    // Predicated region
    $region6: #{_residual_block_impl.1} parent=1 // pred_check
      _
    $region7: #{_residual_block_impl.1} parent=1 // pred_check_branch
      %24 = sbr.rel (0) target = $region9
    $region8: #{_residual_block_impl.1} parent=1 // pred_region
      %s26 = ssub.s32 512, 512
      %27 = vsyncadd [#allocation6], %s26
      %s28 = sshll.u32 [#allocation5], 4
      %s29 = int_to_ptr.vmem [resolvable:$true] %s28
      %34 = dma.hbm_to_vmem [thread:$0]  %s1, 512, %s29, [#allocation6], 128, 128, 8
    $region9: #{_residual_block_impl.1} parent=1 // pred_fallthru
      _
    // Predicated region
    $region10: #{_residual_block_impl.1} parent=1 // pred_check
      _
    $region11: #{_residual_block_impl.1} parent=1 // pred_check_branch
      %36 = sbr.rel (0) target = $region13
    $region12: #{_residual_block_impl.1} parent=1 // pred_region
      _
    $region13: #{_residual_block_impl.1} parent=1 // pred_fallthru
      _
    // Predicated region
    $region14: #{_residual_block_impl.1} parent=1 // pred_check
      _
    $region15: #{_residual_block_impl.1} parent=1 // pred_check_branch
      %38 = sbr.rel (0) target = $region17
    $region16: #{_residual_block_impl.1} parent=1 // pred_region
      %s40 = ssub.s32 512, 512
      %41 = vsyncadd [#allocation6], %s40
      %s42 = sshll.u32 [#allocation7], 4
      %s43 = int_to_ptr.vmem [resolvable:$true] %s42
      %48 = dma.hbm_to_vmem [thread:$0]  %s3, 512, %s43, [#allocation6], 128, 128, 8
    $region17: #{_residual_block_impl.1} parent=1 // pred_fallthru
      _
    // Predicated region
    $region18: #{_residual_block_impl.1} parent=1 // pred_check
      _
    $region19: #{_residual_block_impl.1} parent=1 // pred_check_branch
      %50 = sbr.rel (0) target = $region21
    $region20: #{_residual_block_impl.1} parent=1 // pred_region
      _
    $region21: #{_residual_block_impl.1} parent=1 // pred_fallthru
      _
    // Predicated region
    $region22: #{_residual_block_impl.1} parent=1 // pred_check
      _
    $region23: #{_residual_block_impl.1} parent=1 // pred_check_branch
      %52 = sbr.rel (0) target = $region25
    $region24: #{_residual_block_impl.1} parent=1 // pred_region
      %53 = dma.done [#allocation3], 128
    $region25: #{_residual_block_impl.1} parent=1 // pred_fallthru
      _
    // Predicated region
    $region26: #{_residual_block_impl.1} parent=1 // pred_check
      _
    $region27: #{_residual_block_impl.1} parent=1 // pred_check_branch
      %55 = sbr.rel (0) target = $region29
    $region28: #{_residual_block_impl.1} parent=1 // pred_region
      %56 = dma.done [#allocation6], 512
    $region29: #{_residual_block_impl.1} parent=1 // pred_fallthru
      _
    // Predicated region
    $region30: #{_residual_block_impl.1} parent=1 // pred_check
      _
    $region31: #{_residual_block_impl.1} parent=1 // pred_check_branch
      %58 = sbr.rel (0) target = $region33
    $region32: #{_residual_block_impl.1} parent=1 // pred_region
      %59 = dma.done [#allocation6], 512
    $region33: #{_residual_block_impl.1} parent=1 // pred_fallthru
      _
    %v60 = vld [vmem:[#allocation2] sm:$0xff]
    %v61 = vld [vmem:[#allocation5] sm:$0xff]
    %v62 = vld [vmem:[#allocation5 + $0x8] sm:$0xff]
    %v63 = vld [vmem:[#allocation5 + $0x10] sm:$0xff]
    %v64 = vld [vmem:[#allocation5 + $0x18] sm:$0xff]
    %v65 = vld [vmem:[%s2] sm:$0x1]
    %v67 = vlaneseq
    %v68 = vshrl.u32 %v67, 7
    %v69 = vsub.s32 0, %v68
    %v70 = vrot.slane %v65, %v69
    %vm72 = vcmask 261120
    %v74 = vsel %vm72, %v60, 0
    %76 = vmatprep.subr.mxu0 0.0
    %77 = vmatpush1.msra.mxu0 %v61
    %78 = vmatprep.subr.mxu0 0.0
    %79 = vmatpush1.msra.mxu0 %v62
    %80 = vmatprep.subr.mxu0 0.0
    %81 = vmatpush1.msra.mxu0 %v63
    %82 = vmatprep.subr.mxu0 0.0
    %83 = vmatpush1.msra.mxu0 %v64
    %84 = vmatprep.subr.mxu0 0.0
    %85 = vmatpush1.msra.mxu0 0.0
    %86 = vmatprep.subr.mxu0 0.0
    %87 = vmatpush1.msra.mxu0 0.0
    %88 = vmatprep.subr.mxu0 0.0
    %89 = vmatpush1.msra.mxu0 0.0
    %90 = vmatprep.subr.mxu0 0.0
    %91 = vmatpush1.msra.mxu0 0.0
    %92 = vmatprep.subr.mxu0 0.0
    %93 = vmatpush1.msra.mxu0 0.0
    %94 = vmatprep.subr.mxu0 0.0
    %95 = vmatpush1.msra.mxu0 0.0
    %96 = vmatprep.subr.mxu0 0.0
    %97 = vmatpush1.msra.mxu0 0.0
    %98 = vmatprep.subr.mxu0 0.0
    %99 = vmatpush1.msra.mxu0 0.0
    %100 = vmatprep.subr.mxu0 0.0
    %101 = vmatpush1.msra.mxu0 0.0
    %102 = vmatprep.subr.mxu0 0.0
    %103 = vmatpush1.msra.mxu0 0.0
    %104 = vmatprep.subr.mxu0 0.0
    %105 = vmatpush1.msra.mxu0 0.0
    %106 = vmatprep.subr.mxu0 0.0
    %107 = vmatpush1.msra.mxu0 0.0
    %108 = vmatprep.subr.mxu0 0.0
    %109 = vmatpush1.msra.mxu0 0.0
    %110 = vmatprep.subr.mxu0 0.0
    %111 = vmatpush1.msra.mxu0 0.0
    %112 = vmatprep.subr.mxu0 0.0
    %113 = vmatpush1.msra.mxu0 0.0
    %114 = vmatprep.subr.mxu0 0.0
    %115 = vmatpush1.msra.mxu0 0.0
    %116 = vmatprep.subr.mxu0 0.0
    %117 = vmatpush1.msra.mxu0 0.0
    %118 = vmatprep.subr.mxu0 0.0
    %119 = vmatpush1.msra.mxu0 0.0
    %120 = vmatprep.subr.mxu0 0.0
    %121 = vmatpush1.msra.mxu0 0.0
    %122 = vmatprep.subr.mxu0 0.0
    %123 = vmatpush1.msra.mxu0 0.0
    %124 = vmatprep.subr.mxu0 0.0
    %125 = vmatpush1.msra.mxu0 0.0
    %126 = vmatprep.subr.mxu0 0.0
    %127 = vmatpush1.msra.mxu0 0.0
    %128 = vmatprep.subr.mxu0 0.0
    %129 = vmatpush1.msra.mxu0 0.0
    %130 = vmatprep.subr.mxu0 0.0
    %131 = vmatpush1.msra.mxu0 0.0
    %132 = vmatprep.subr.mxu0 0.0
    %133 = vmatpush1.msra.mxu0 0.0
    %134 = vmatprep.subr.mxu0 0.0
    %135 = vmatpush1.msra.mxu0 0.0
    %136 = vmatprep.subr.mxu0 0.0
    %137 = vmatpush1.msra.mxu0 0.0
    %138 = vmatprep.subr.mxu0 0.0
    %139 = vmatpush1.msra.mxu0 0.0
    %140 = vmatprep.mubr.f32.mxu0 0.0
    %141 = vmatmul.mubr.f32.gmra.mrb[0].mxu0 %v74
    %v142 = vpop.f32.mrb[0].mxu0
    %v143 = vadd.f32 %v70, %v142
    %v144 = vpop.f32.mrb[0].mxu0
    %145 = vdwg.mxu0
    %v146 = vmul.f32 %v143, 0.5
    %v147 = vmul.f32 %v143, 0.70710677
    %v148 = verf.f32.pop %v147
    %v149 = vadd.f32 %v148, 1.0
    %v150 = vmul.f32 %v146, %v149
    %v151 = vld [vmem:[#allocation7] sm:$0xff]
    %v152 = vld [vmem:[#allocation7 + $0x8] sm:$0xff]
    %v153 = vld [vmem:[#allocation7 + $0x10] sm:$0xff]
    %v154 = vld [vmem:[#allocation7 + $0x18] sm:$0xff]
    %v155 = vld [vmem:[%s4] sm:$0x1]
    %v157 = vlaneseq
    %v158 = vshrl.u32 %v157, 7
    %v159 = vsub.s32 0, %v158
    %v160 = vrot.slane %v155, %v159
    %v163 = vsel %vm72, %v150, 0
    %165 = vmatprep.subr.mxu0 0.0
    %166 = vmatpush1.msra.mxu0 %v151
    %167 = vmatprep.subr.mxu0 0.0
    %168 = vmatpush1.msra.mxu0 %v152
    %169 = vmatprep.subr.mxu0 0.0
    %170 = vmatpush1.msra.mxu0 %v153
    %171 = vmatprep.subr.mxu0 0.0
    %172 = vmatpush1.msra.mxu0 %v154
    %173 = vmatprep.subr.mxu0 0.0
    %174 = vmatpush1.msra.mxu0 0.0
    %175 = vmatprep.subr.mxu0 0.0
    %176 = vmatpush1.msra.mxu0 0.0
    %177 = vmatprep.subr.mxu0 0.0
    %178 = vmatpush1.msra.mxu0 0.0
    %179 = vmatprep.subr.mxu0 0.0
    %180 = vmatpush1.msra.mxu0 0.0
    %181 = vmatprep.subr.mxu0 0.0
    %182 = vmatpush1.msra.mxu0 0.0
    %183 = vmatprep.subr.mxu0 0.0
    %184 = vmatpush1.msra.mxu0 0.0
    %185 = vmatprep.subr.mxu0 0.0
    %186 = vmatpush1.msra.mxu0 0.0
    %187 = vmatprep.subr.mxu0 0.0
    %188 = vmatpush1.msra.mxu0 0.0
    %189 = vmatprep.subr.mxu0 0.0
    %190 = vmatpush1.msra.mxu0 0.0
    %191 = vmatprep.subr.mxu0 0.0
    %192 = vmatpush1.msra.mxu0 0.0
    %193 = vmatprep.subr.mxu0 0.0
    %194 = vmatpush1.msra.mxu0 0.0
    %195 = vmatprep.subr.mxu0 0.0
    %196 = vmatpush1.msra.mxu0 0.0
    %197 = vmatprep.subr.mxu0 0.0
    %198 = vmatpush1.msra.mxu0 0.0
    %199 = vmatprep.subr.mxu0 0.0
    %200 = vmatpush1.msra.mxu0 0.0
    %201 = vmatprep.subr.mxu0 0.0
    %202 = vmatpush1.msra.mxu0 0.0
    %203 = vmatprep.subr.mxu0 0.0
    %204 = vmatpush1.msra.mxu0 0.0
    %205 = vmatprep.subr.mxu0 0.0
    %206 = vmatpush1.msra.mxu0 0.0
    %207 = vmatprep.subr.mxu0 0.0
    %208 = vmatpush1.msra.mxu0 0.0
    %209 = vmatprep.subr.mxu0 0.0
    %210 = vmatpush1.msra.mxu0 0.0
    %211 = vmatprep.subr.mxu0 0.0
    %212 = vmatpush1.msra.mxu0 0.0
    %213 = vmatprep.subr.mxu0 0.0
    %214 = vmatpush1.msra.mxu0 0.0
    %215 = vmatprep.subr.mxu0 0.0
    %216 = vmatpush1.msra.mxu0 0.0
    %217 = vmatprep.subr.mxu0 0.0
    %218 = vmatpush1.msra.mxu0 0.0
    %219 = vmatprep.subr.mxu0 0.0
    %220 = vmatpush1.msra.mxu0 0.0
    %221 = vmatprep.subr.mxu0 0.0
    %222 = vmatpush1.msra.mxu0 0.0
    %223 = vmatprep.subr.mxu0 0.0
    %224 = vmatpush1.msra.mxu0 0.0
    %225 = vmatprep.subr.mxu0 0.0
    %226 = vmatpush1.msra.mxu0 0.0
    %227 = vmatprep.subr.mxu0 0.0
    %228 = vmatpush1.msra.mxu0 0.0
    %229 = vmatprep.mubr.f32.mxu0 0.0
    %230 = vmatmul.mubr.f32.gmra.mrb[0].mxu0 %v163
    %v231 = vpop.f32.mrb[0].mxu0
    %v232 = vadd.f32 %v160, %v231
    %v233 = vpop.f32.mrb[0].mxu0
    %234 = vdwg.mxu0
    %v235 = vmul.f32 %v232, 0.5
    %v236 = vmul.f32 %v232, 0.70710677
    %v237 = verf.f32.pop %v236
    %v238 = vadd.f32 %v237, 1.0
    %v239 = vmul.f32 %v235, %v238
    %v240 = vadd.f32 %v239, %v60
    %241 = vst.msk [vmem:[#allocation8] sm:$0xff] %vm72, %v240
    // Predicated region
    $region34: #{_residual_block_impl.1} parent=1 // pred_check
      _
    $region35: #{_residual_block_impl.1} parent=1 // pred_check_branch
      %243 = sbr.rel (0) target = $region37
    $region36: #{_residual_block_impl.1} parent=1 // pred_region
      %s245 = ssub.s32 128, 128
      %246 = vsyncadd [#allocation4], %s245
      %s248 = sshll.u32 [#allocation8], 4
      %s249 = int_to_ptr.vmem [resolvable:$true] %s248
      %251 = dma.vmem_to_hbm [thread:$0]  %s249, 128, %s5, [#allocation4]
    $region37: #{_residual_block_impl.1} parent=1 // pred_fallthru
      _
    // Predicated region
    $region38: #{_residual_block_impl.1} parent=1 // pred_check
      _
    $region39: #{_residual_block_impl.1} parent=1 // pred_check_branch
      %253 = sbr.rel (0) target = $region41
    $region40: #{_residual_block_impl.1} parent=1 // pred_region
      %254 = dma.done [#allocation4], 128
    $region41: #{_residual_block_impl.1} parent=1 // pred_fallthru
      _
    %255 = vsyncpa [#allocation3], 1
    %256 = vsyncpa [#allocation6], 1
    %257 = vsyncpa [#allocation4], 1

</llo_original>
